<compile_context>
chip_gen: v5e
topology: v5e:2x2
jax: 0.10.0
libtpu: 0.0.40
codegen_flags: <defaults>
</compile_context>

<pallas_src>
import functools

import jax
import jax.numpy as jnp
import numpy as np
from jax.experimental import pallas as pl
from jax.experimental.pallas import tpu as pltpu

CATE2_CNT = 135
EPS = 1e-5                      # PyTorch BatchNorm default eps
KMAX = 5                        # widest GLU conv (glu2); glu1 (K=3) is embedded in it
HALO = KMAX - 1                 # 4 rows of left halo carried between seq tiles
PAD = KMAX // 2                 # 2 (PyTorch Conv1d padding=k//2)
ALIGN = 8                       # live block starts on an 8-sublane boundary
_PREC = jax.lax.Precision.HIGHEST


def _round_up(x, m):
    return (x + m - 1) // m * m


@functools.lru_cache(maxsize=None)
def _vmem_limit_bytes():
    # v5e/v6e have 128 MiB VMEM per core, v7x 64 MiB: size the scoped limit to
    # what the chip actually has instead of a one-size-fits-all cap.
    try:
        cap = int(pltpu.get_tpu_info().vmem_capacity_bytes)
    except Exception:
        return 48 * 1024 * 1024
    return int(min(max(cap * 3 // 4, 32 * 1024 * 1024), 100 * 1024 * 1024))


def _batch_tile(B, cap):
    """Batch tile that is a multiple of 8 (or == B), capped, and gives >= 2
    tiles when possible so the 'parallel' axis can shard across v7x's 2 TCs."""
    if B <= 8:
        return B
    half = (pl.cdiv(B, 2) + 7) // 8 * 8
    return max(8, min(cap, half) // 8 * 8)


# ---------------------------------------------------------------------------
# Kernel 1: fused {glu1, glu2} gated conv + online max over the sequence
# ---------------------------------------------------------------------------
def glu_pair_max_kernel(x_ref, w_ref, b_ref, out_ref, xw_ref, mx_ref, *, L, LT, NXB):
    """One (batch-tile, seq-tile) grid step.

    x_ref : (BT, LT, Dp)      bf16  non-overlapping seq block of x (Dp lane-padded)
    w_ref : (KMAX*Dp, 4*Dm)   bf16  im2col-packed taps, columns = [a1 | a2 | b1 | b2]
    b_ref : (1, 4*Dm)         f32   packed conv biases
    out_ref: (BT, 2*Dm)       f32   [max_l h1 | max_l h2]  (written on last seq step)
    xw_ref: (BT, LT+8, Dp)    bf16  sliding window; live block at rows [8, 8+LT),
                                    left halo at rows [4, 8), rows [0, 4) dead pad
    mx_ref: (BT, 2*Dm)        f32   running max accumulator
    """
    t = pl.program_id(1)
    ns = pl.num_programs(1)
    BT, _, Dp = x_ref.shape
    Dg = w_ref.shape[1]
    Dh = Dg // 2

    @pl.when(t == 0)
    def _init():
        xw_ref[:, ALIGN - HALO:ALIGN, :] = jnp.zeros((BT, HALO, Dp), jnp.bfloat16)
        mx_ref[...] = jnp.full((BT, Dh), -jnp.inf, jnp.float32)

    @pl.when(t > 0)
    def _slide():  # previous block's last HALO rows become the left halo
        xw_ref[:, ALIGN - HALO:ALIGN, :] = xw_ref[:, ALIGN + LT - HALO:ALIGN + LT, :]

    # Store the current block (bf16, 8-sublane aligned).  The right-edge zero
    # masking (conv zero padding / partially out-of-bounds block rows) only runs
    # on the last real block and flush steps; interior tiles store unmasked.
    xb = x_ref[...]

    @pl.when(t < NXB - 1)
    def _store_plain():
        xw_ref[:, ALIGN:, :] = xb

    @pl.when(t >= NXB - 1)
    def _store_masked():
        row = t * LT + jax.lax.broadcasted_iota(jnp.int32, (1, LT, 1), 1)
        xw_ref[:, ALIGN:, :] = jnp.where(row < L, xb, 0.0).astype(jnp.bfloat16)

    # im2col: lay the KMAX shifted slices side by side along lanes and do ONE
    # deep (BT*LT, KMAX*Dp) @ (KMAX*Dp, 4*Dm) bf16 MXU matmul (contraction depth
    # KMAX*Dp instead of Dp, no f32 accumulator read-modify-write passes).
    xw = xw_ref[...]
    cols = [xw[:, ALIGN - HALO + k:ALIGN - HALO + k + LT, :] for k in range(KMAX)]
    im2col = jnp.concatenate(cols, axis=-1).reshape(BT * LT, KMAX * Dp)
    acc = jnp.dot(im2col, w_ref[...], preferred_element_type=jnp.float32) + b_ref[...]

    # f32 gating.  (bf16 gating is ~2x VPU/EUP on v6e/v7x but not on v5e; kept
    # f32 here for portability and accuracy.)
    h = (acc[:, :Dh] * jax.nn.sigmoid(acc[:, Dh:])).reshape(BT, LT, Dh)

    # Fold into the running max.  Only edge tiles (first tile / last real block
    # / flush) need the out-of-range -inf masking.
    edge = jnp.logical_or(t == 0, t >= NXB - 1)

    @pl.when(edge)
    def _max_edge():
        lpos = t * LT - PAD + jax.lax.broadcasted_iota(jnp.int32, (1, LT, 1), 1)
        hm = jnp.where(jnp.logical_and(lpos >= 0, lpos < L), h, -jnp.inf)
        mx_ref[...] = jnp.maximum(mx_ref[...], jnp.max(hm, axis=1))

    @pl.when(jnp.logical_not(edge))
    def _max_inner():
        mx_ref[...] = jnp.maximum(mx_ref[...], jnp.max(h, axis=1))

    @pl.when(t == ns - 1)
    def _finalize():
        out_ref[...] = mx_ref[...]


def glu_pair_max(x, w_all, bias_all, *, bt=None, lt=None):
    """x: (B, L, Dp) bf16 -> (B, 2*Dm) f32 = [GLU_3(x).max(seq) | GLU_5(x).max(seq)]."""
    x = x.astype(jnp.bfloat16)
    B, L, Dp = x.shape
    KDp, Dg = w_all.shape
    Dh = Dg // 2
    assert KDp == KMAX * Dp and L >= 1

    # Per-row VMEM of the big per-step intermediates: f32 pre-activation (4Dm),
    # f32 gated h (2Dm), bf16 im2col (KMAX*Dp).  Keep them around <=12 MiB
    # (v7x-safe) and pick the largest lane/sublane-aligned tiles inside that.
    per_row = 4 * Dg + 4 * Dh + 2 * KDp
    row_budget = max(64, (12 << 20) // per_row)
    if lt is None:
        lt = min(512, _round_up(L + PAD, 8))        # lt >= L+PAD when short => no flush step
        lt = max(8, min(lt, row_budget // 8 // 8 * 8))
    if bt is None:
        bt = _batch_tile(B, min(32, max(8, row_budget // lt // 8 * 8)))

    nb = pl.cdiv(B, bt)
    nxb = pl.cdiv(L, lt)            # number of real x blocks along seq
    ns = pl.cdiv(L + PAD, lt)       # + a flush step only when the trailing halo needs one

    kernel = functools.partial(glu_pair_max_kernel, L=L, LT=lt, NXB=nxb)
    grid_spec = pltpu.PrefetchScalarGridSpec(
        num_scalar_prefetch=0,
        grid=(nb, ns),
        in_specs=[
            # x blocks are non-overlapping; a flush step (if any) re-reads (and
            # masks) the clamped last block => no host-side padding of x.
            pl.BlockSpec((bt, lt, Dp), lambda i, t: (i, jnp.minimum(t, nxb - 1), 0)),
            pl.BlockSpec((KDp, Dg), lambda i, t: (0, 0)),   # resident weights
            pl.BlockSpec((1, Dg), lambda i, t: (0, 0)),
        ],
        out_specs=pl.BlockSpec((bt, Dh), lambda i, t: (i, 0)),
        scratch_shapes=[
            pltpu.VMEM((bt, lt + ALIGN, Dp), jnp.bfloat16),   # bf16 sliding x window
            pltpu.VMEM((bt, Dh), jnp.float32),                # running max
        ],
    )
    return pl.pallas_call(
        kernel,
        out_shape=jax.ShapeDtypeStruct((B, Dh), jnp.float32),
        grid_spec=grid_spec,
        compiler_params=pltpu.CompilerParams(
            dimension_semantics=("parallel", "arbitrary"),
            vmem_limit_bytes=_vmem_limit_bytes()),
    )(x, w_all, bias_all)


# ---------------------------------------------------------------------------
# Kernel 2: (bn1+fc+bn2 folded, fused) -> relu -> clf -> cate1 masking
# ---------------------------------------------------------------------------
def head_kernel(g_ref, w1_ref, b1_ref, w2_ref, b2_ref, mask_ref, out_ref):
    h = jnp.dot(g_ref[...], w1_ref[...], preferred_element_type=jnp.float32)
    h = jnp.maximum(h + b1_ref[...], 0.0)                        # folded bn1/fc/bn2 + relu
    logits = jnp.dot(h, w2_ref[...], preferred_element_type=jnp.float32) + b2_ref[...]
    # output[i, mask1[cate1[i]]] = -100
    out_ref[...] = jnp.where(mask_ref[...] > 0.5, jnp.float32(-100.0), logits)


def head(g, w1, b1, w2, b2, mask_rows, *, bt=None):
    B, D4 = g.shape
    hd = w1.shape[1]
    N = w2.shape[1]
    if bt is None:
        bt = _batch_tile(B, 256)
    nb = pl.cdiv(B, bt)
    grid_spec = pltpu.PrefetchScalarGridSpec(
        num_scalar_prefetch=0,
        grid=(nb,),
        in_specs=[
            pl.BlockSpec((bt, D4), lambda i: (i, 0)),
            pl.BlockSpec((D4, hd), lambda i: (0, 0)),    # weights stay resident
            pl.BlockSpec((1, hd), lambda i: (0, 0)),
            pl.BlockSpec((hd, N), lambda i: (0, 0)),
            pl.BlockSpec((1, N), lambda i: (0, 0)),
            pl.BlockSpec((bt, N), lambda i: (i, 0)),
        ],
        out_specs=pl.BlockSpec((bt, N), lambda i: (i, 0)),
    )
    return pl.pallas_call(
        head_kernel,
        out_shape=jax.ShapeDtypeStruct((B, N), jnp.float32),
        grid_spec=grid_spec,
        compiler_params=pltpu.CompilerParams(
            dimension_semantics=("parallel",),
            vmem_limit_bytes=_vmem_limit_bytes()),
    )(g, w1, b1, w2, b2, mask_rows)


# ---------------------------------------------------------------------------
# Parameter init + host-side packing (glue)
# ---------------------------------------------------------------------------
def xavier_normal(key, fan_in, fan_out, shape):
    std = (2.0 / (fan_in + fan_out)) ** 0.5
    return std * jax.random.normal(key, shape, jnp.float32)


def init_params(key, vocab_size, D, h_d, n_cate1):
    ks = jax.random.split(key, 12)
    emb = 0.5 * jax.random.normal(ks[0], (vocab_size, D), jnp.float32)
    emb = emb.at[0].set(0.0)                      # padding_idx = 0

    def glu_params(k, K):
        ka, kb, kc, kd = jax.random.split(k, 4)
        # (K, D_in, D_out) == PyTorch Conv1d (out, in, K) transposed; tap order
        # kept as cross-correlation (no kernel flip).
        wa = xavier_normal(ka, D * K, D, (K, D, D))
        wb = xavier_normal(kb, D * K, D, (K, D, D))
        ba = 0.1 * jax.random.normal(kc, (D,), jnp.float32)
        bb = 0.1 * jax.random.normal(kd, (D,), jnp.float32)
        return wa, ba, wb, bb

    def bn_params(k, dim):
        k1, k2, k3, k4 = jax.random.split(k, 4)
        return (1.0 + 0.1 * jax.random.normal(k1, (1, dim), jnp.float32),   # gamma
                0.1 * jax.random.normal(k2, (1, dim), jnp.float32),          # beta
                0.1 * jax.random.normal(k3, (1, dim), jnp.float32),          # running mean
                jax.random.uniform(k4, (1, dim), jnp.float32, 0.5, 1.5))     # running var

    g1, b1, m1, v1 = bn_params(ks[5], 4 * D)
    g2, b2, m2, v2 = bn_params(ks[6], h_d)
    return {
        "embedding": emb,
        "glu1": glu_params(ks[1], 3),
        "glu2": glu_params(ks[2], 5),
        "fc_w": xavier_normal(ks[3], 4 * D, h_d, (4 * D, h_d)),
        "fc_b": 0.1 * jax.random.normal(ks[7], (1, h_d), jnp.float32),
        "clf_w": xavier_normal(ks[4], h_d, CATE2_CNT, (h_d, CATE2_CNT)),
        "clf_b": 0.1 * jax.random.normal(ks[8], (1, CATE2_CNT), jnp.float32),
        "bn1_gamma": g1, "bn1_beta": b1, "bn1_mean": m1, "bn1_var": v1,
        "bn2_gamma": g2, "bn2_beta": b2, "bn2_mean": m2, "bn2_var": v2,
        # mask1: per-cate1 boolean mask over the CATE2_CNT classes
        "mask1": jax.random.bernoulli(ks[9], 0.3, (n_cate1, CATE2_CNT)),
    }


def pack_params(p, D, h_d):
    """One-time host glue: im2col-pack GLU weights (conv-input dim lane-padded to
    a multiple of 128), fold eval-mode BN into a single fused fc, pad clf/mask."""
    Dp = _round_up(D, 128)      # lane-pad the conv contraction dim

    # --- fused GLU weights: rows = (tap k, padded channel d), cols [a1|a2|b1|b2]
    wa1, ba1, wb1, bb1 = p["glu1"]
    wa2, ba2, wb2, bb2 = p["glu2"]
    w = jnp.zeros((KMAX, Dp, 4 * D), jnp.float32)
    w = w.at[1:4, :D, 0 * D:1 * D].set(wa1)     # glu1 taps sit at offsets -1..+1
    w = w.at[:,   :D, 1 * D:2 * D].set(wa2)
    w = w.at[1:4, :D, 2 * D:3 * D].set(wb1)
    w = w.at[:,   :D, 3 * D:4 * D].set(wb2)
    glu_w = w.reshape(KMAX * Dp, 4 * D).astype(jnp.bfloat16)
    glu_b = jnp.concatenate([ba1, ba2, bb1, bb2]).reshape(1, 4 * D)

    # --- lane-padded bf16 embedding table (zero columns beyond D) ---
    emb_pad = jnp.zeros((p["embedding"].shape[0], Dp), jnp.float32)
    emb_pad = emb_pad.at[:, :D].set(p["embedding"]).astype(jnp.bfloat16)

    # --- fold eval-mode bn1/bn2 into one fused fc; reorder rows to the kernel's
    #     [title1 | title2 | desc1 | desc2] concat order ---
    s1 = p["bn1_gamma"] * jax.lax.rsqrt(p["bn1_var"] + EPS)
    t1 = p["bn1_beta"] - p["bn1_mean"] * s1
    s2 = p["bn2_gamma"] * jax.lax.rsqrt(p["bn2_var"] + EPS)
    t2 = p["bn2_beta"] - p["bn2_mean"] * s2
    w_eff = p["fc_w"] * s1.reshape(-1, 1) * s2.reshape(1, -1)                 # (4D, h_d)
    b_eff = (jnp.dot(t1, p["fc_w"], precision=_PREC) + p["fc_b"]) * s2 + t2   # (1, h_d)
    # PyTorch concat order is [title1, desc1, title2, desc2]; kernel uses [t1,t2,d1,d2]
    fc_w = jnp.concatenate([w_eff[0:D], w_eff[2 * D:3 * D],
                            w_eff[D:2 * D], w_eff[3 * D:4 * D]], axis=0)      # (4D, h_d)

    # --- lane-dense (multiple-of-128) classifier / mask columns ---
    n_pad = _round_up(CATE2_CNT, 128)
    clf_w = jnp.zeros((h_d, n_pad), jnp.float32).at[:, :CATE2_CNT].set(p["clf_w"])
    clf_b = jnp.zeros((1, n_pad), jnp.float32).at[:, :CATE2_CNT].set(p["clf_b"])
    n_cate1 = p["mask1"].shape[0]
    mask_pad = jnp.zeros((n_cate1, n_pad), jnp.bfloat16).at[:, :CATE2_CNT].set(
        p["mask1"].astype(jnp.bfloat16))

    return {"emb": emb_pad, "glu_w": glu_w, "glu_b": glu_b,
            "fc_w": fc_w, "fc_b": b_eff,
            "clf_w": clf_w, "clf_b": clf_b, "mask_pad": mask_pad}


# ---------------------------------------------------------------------------
# Forward (mirrors Cate2Classifier.forward)
# ---------------------------------------------------------------------------
def forward(params, packed, title, desc, cate1):
    title_vec = packed["emb"][title]               # (B, Lt, Dp) bf16  gather (glue)
    desc_vec = packed["emb"][desc]                 # (B, Ld, Dp) bf16

    gt = glu_pair_max(title_vec, packed["glu_w"], packed["glu_b"])   # [title1 | title2]
    gd = glu_pair_max(desc_vec, packed["glu_w"], packed["glu_b"])    # [desc1  | desc2 ]
    g = jnp.concatenate([gt, gd], axis=1)          # (B, 4D) f32, order [t1|t2|d1|d2]

    mask_rows = packed["mask_pad"][cate1]          # (B, 256) bf16   gather (glue)
    out = head(g, packed["fc_w"], packed["fc_b"],
               packed["clf_w"], packed["clf_b"], mask_rows)
    return out[:, :CATE2_CNT]


# ---------------------------------------------------------------------------
# Pure-JAX reference (same bf16 quantization of x / GLU weights as the kernel)
# ---------------------------------------------------------------------------
def reference_forward(params, title, desc, cate1):
    def q(a):
        return a.astype(jnp.bfloat16).astype(jnp.float32)

    def glu(x, wa, ba, wb, bb):
        K = wa.shape[0]
        pad = K // 2
        B, L, D = x.shape
        xp = jnp.pad(q(x), ((0, 0), (pad, pad), (0, 0)))
        a = ba.reshape(1, 1, -1) + sum(
            jnp.einsum("bld,de->ble", xp[:, k:k + L, :], q(wa[k]), precision=_PREC)
            for k in range(K))
        b = bb.reshape(1, 1, -1) + sum(
            jnp.einsum("bld,de->ble", xp[:, k:k + L, :], q(wb[k]), precision=_PREC)
            for k in range(K))
        return a * jax.nn.sigmoid(b)

    def bn(x, g, b, m, v):
        return (x - m) * jax.lax.rsqrt(v + EPS) * g + b

    emb = params["embedding"]
    title_vec = emb[title]
    desc_vec = emb[desc]
    t1 = glu(title_vec, *params["glu1"]).max(axis=1)
    t2 = glu(title_vec, *params["glu2"]).max(axis=1)
    d1 = glu(desc_vec, *params["glu1"]).max(axis=1)
    d2 = glu(desc_vec, *params["glu2"]).max(axis=1)
    glu_vec = jnp.concatenate([t1, d1, t2, d2], axis=1)
    h = bn(glu_vec, params["bn1_gamma"], params["bn1_beta"],
           params["bn1_mean"], params["bn1_var"])
    h = jnp.dot(h, params["fc_w"], precision=_PREC) + params["fc_b"]
    h = bn(h, params["bn2_gamma"], params["bn2_beta"],
           params["bn2_mean"], params["bn2_var"])
    h = jnp.maximum(h, 0.0)
    logits = jnp.dot(h, params["clf_w"], precision=_PREC) + params["clf_b"]
    return jnp.where(params["mask1"][cate1], jnp.float32(-100.0), logits)


if __name__ == "__main__":
    B, Lt, Ld = 2, 8, 12
    D, h_d = 64, 64
    vocab_size, n_cate1 = 50, 10

    key = jax.random.PRNGKey(0)
    kp, kt, kd, kc = jax.random.split(key, 4)

    params = init_params(kp, vocab_size, D, h_d, n_cate1)
    packed = pack_params(params, D, h_d)

    title = jax.random.randint(kt, (B, Lt), 0, vocab_size, dtype=jnp.int32)
    desc = jax.random.randint(kd, (B, Ld), 0, vocab_size, dtype=jnp.int32)
    cate1 = jax.random.randint(kc, (B,), 0, n_cate1, dtype=jnp.int32)

    out = jax.block_until_ready(forward(params, packed, title, desc, cate1))
    assert out.shape == (B, CATE2_CNT) and out.dtype == jnp.float32

    ref = jax.block_until_ready(reference_forward(params, title, desc, cate1))
    np.testing.assert_allclose(np.asarray(out), np.asarray(ref), rtol=1e-2, atol=1e-2)
    print("KERNEL_OK")
</pallas_src>

<mosaic_0001>
module attributes {stable_mosaic.version = 11 : i64} {
  func.func @glu_pair_max_kernel(%arg0: i32, %arg1: i32, %arg2: memref<2x16x128xbf16, #tpu.memory_space<vmem>>, %arg3: memref<640x256xbf16, #tpu.memory_space<vmem>>, %arg4: memref<1x256xf32, #tpu.memory_space<vmem>>, %arg5: memref<2x128xf32, #tpu.memory_space<vmem>>, %arg6: memref<2x24x128xbf16, #tpu.memory_space<vmem>>, %arg7: memref<2x128xf32, #tpu.memory_space<vmem>>) attributes {dimension_semantics = [#tpu.dimension_semantics<parallel>, #tpu.dimension_semantics<arbitrary>], iteration_bounds = array<i64: 1, 1>, scalar_prefetch = 0 : i64, scratch_operands = 2 : i64, tpu.core_type = #tpu.core_type<tc>, window_params = [{transform_indices = @transform_0, window_bounds = array<i64: 2, 16, 128>}, {pipeline_mode = #tpu.pipeline_mode<synchronous>, transform_indices = @transform_1, window_bounds = array<i64: 640, 256>}, {pipeline_mode = #tpu.pipeline_mode<synchronous>, transform_indices = @transform_2, window_bounds = array<i64: 1, 256>}, {transform_indices = @transform_3, window_bounds = array<i64: 2, 128>}]} {
    %c0_i32 = arith.constant 0 : i32
    %0 = arith.cmpi eq, %arg1, %c0_i32 : i32
    %1 = arith.extui %0 : i1 to i32
    %c0_i32_0 = arith.constant 0 : i32
    %2 = arith.cmpi ne, %1, %c0_i32_0 : i32
    scf.if %2 {
      %cst_23 = arith.constant 0.000000e+00 : bf16
      %46 = vector.broadcast %cst_23 : bf16 to vector<2x4x128xbf16>
      %c0_24 = arith.constant 0 : index
      %c4 = arith.constant 4 : index
      %c0_25 = arith.constant 0 : index
      %47 = vector.load %arg6[%c0_24, %c4, %c0_25] : memref<2x24x128xbf16, #tpu.memory_space<vmem>>, vector<2x4x128xbf16>
      tpu.vector_store %arg6[%c0_24, %c4, %c0_25], %46 {strides = array<i32>} : memref<2x24x128xbf16, #tpu.memory_space<vmem>>, vector<2x4x128xbf16>,
      %cst_26 = arith.constant 0xFF800000 : f32
      %48 = vector.broadcast %cst_26 : f32 to vector<2x128xf32>
      %c0_27 = arith.constant 0 : index
      %c0_28 = arith.constant 0 : index
      %49 = vector.load %arg7[%c0_27, %c0_28] : memref<2x128xf32, #tpu.memory_space<vmem>>, vector<2x128xf32>
      tpu.vector_store %arg7[%c0_27, %c0_28], %48 {strides = array<i32>} : memref<2x128xf32, #tpu.memory_space<vmem>>, vector<2x128xf32>,
    } else {
    }
    %c0_i32_1 = arith.constant 0 : i32
    %3 = arith.cmpi sgt, %arg1, %c0_i32_1 : i32
    %4 = arith.extui %3 : i1 to i32
    %c0_i32_2 = arith.constant 0 : i32
    %5 = arith.cmpi ne, %4, %c0_i32_2 : i32
    scf.if %5 {
      %c0_23 = arith.constant 0 : index
      %c20 = arith.constant 20 : index
      %c0_24 = arith.constant 0 : index
      %46 = vector.load %arg6[%c0_23, %c20, %c0_24] : memref<2x24x128xbf16, #tpu.memory_space<vmem>>, vector<2x4x128xbf16>
      %c0_25 = arith.constant 0 : index
      %c4 = arith.constant 4 : index
      %c0_26 = arith.constant 0 : index
      %47 = vector.load %arg6[%c0_25, %c4, %c0_26] : memref<2x24x128xbf16, #tpu.memory_space<vmem>>, vector<2x4x128xbf16>
      tpu.vector_store %arg6[%c0_25, %c4, %c0_26], %46 {strides = array<i32>} : memref<2x24x128xbf16, #tpu.memory_space<vmem>>, vector<2x4x128xbf16>,
    } else {
    }
    %c0 = arith.constant 0 : index
    %c0_3 = arith.constant 0 : index
    %c0_4 = arith.constant 0 : index
    %6 = vector.load %arg2[%c0, %c0_3, %c0_4] : memref<2x16x128xbf16, #tpu.memory_space<vmem>>, vector<2x16x128xbf16>
    %c0_i32_5 = arith.constant 0 : i32
    %7 = arith.cmpi slt, %arg1, %c0_i32_5 : i32
    %8 = arith.extui %7 : i1 to i32
    %c0_i32_6 = arith.constant 0 : i32
    %9 = arith.cmpi ne, %8, %c0_i32_6 : i32
    scf.if %9 {
      %c0_23 = arith.constant 0 : index
      %c8 = arith.constant 8 : index
      %c0_24 = arith.constant 0 : index
      %46 = vector.load %arg6[%c0_23, %c8, %c0_24] : memref<2x24x128xbf16, #tpu.memory_space<vmem>>, vector<2x16x128xbf16>
      tpu.vector_store %arg6[%c0_23, %c8, %c0_24], %6 {strides = array<i32>} : memref<2x24x128xbf16, #tpu.memory_space<vmem>>, vector<2x16x128xbf16>,
    } else {
    }
    %c0_i32_7 = arith.constant 0 : i32
    %10 = arith.cmpi sge, %arg1, %c0_i32_7 : i32
    %11 = arith.extui %10 : i1 to i32
    %c0_i32_8 = arith.constant 0 : i32
    %12 = arith.cmpi ne, %11, %c0_i32_8 : i32
    scf.if %12 {
      %c16_i32 = arith.constant 16 : i32
      %46 = arith.muli %arg1, %c16_i32 : i32
      %47 = tpu.iota {dimensions = array<i32: 1>} : vector<1x16x1xi32>
      %48 = vector.broadcast %46 : i32 to vector<1x16x1xi32>
      %49 = arith.addi %48, %47 : vector<1x16x1xi32>
      %c8_i32 = arith.constant 8 : i32
      %50 = vector.broadcast %c8_i32 : i32 to vector<1x16x1xi32>
      %51 = arith.cmpi slt, %49, %50 : vector<1x16x1xi32>
      %cst_23 = arith.constant 0.000000e+00 : f32
      %52 = arith.truncf %cst_23 : f32 to bf16
      %53 = vector.shape_cast %51 : vector<1x16x1xi1> to vector<1x16x1xi1>
      %54 = vector.broadcast %53 : vector<1x16x1xi1> to vector<2x16x128xi1>
      %55 = vector.broadcast %52 : bf16 to vector<2x16x128xbf16>
      %56 = arith.select %54, %6, %55 : vector<2x16x128xi1>, vector<2x16x128xbf16>
      %c0_24 = arith.constant 0 : index
      %c8 = arith.constant 8 : index
      %c0_25 = arith.constant 0 : index
      %57 = vector.load %arg6[%c0_24, %c8, %c0_25] : memref<2x24x128xbf16, #tpu.memory_space<vmem>>, vector<2x16x128xbf16>
      tpu.vector_store %arg6[%c0_24, %c8, %c0_25], %56 {strides = array<i32>} : memref<2x24x128xbf16, #tpu.memory_space<vmem>>, vector<2x16x128xbf16>,
    } else {
    }
    %c0_9 = arith.constant 0 : index
    %c0_10 = arith.constant 0 : index
    %c0_11 = arith.constant 0 : index
    %13 = vector.load %arg6[%c0_9, %c0_10, %c0_11] : memref<2x24x128xbf16, #tpu.memory_space<vmem>>, vector<2x24x128xbf16>
    %14 = vector.extract_strided_slice %13 {offsets = [0, 4, 0], sizes = [2, 16, 128], strides = [1, 1, 1]} : vector<2x24x128xbf16> to vector<2x16x128xbf16>
    %15 = vector.extract_strided_slice %13 {offsets = [0, 5, 0], sizes = [2, 16, 128], strides = [1, 1, 1]} : vector<2x24x128xbf16> to vector<2x16x128xbf16>
    %16 = vector.extract_strided_slice %13 {offsets = [0, 6, 0], sizes = [2, 16, 128], strides = [1, 1, 1]} : vector<2x24x128xbf16> to vector<2x16x128xbf16>
    %17 = vector.extract_strided_slice %13 {offsets = [0, 7, 0], sizes = [2, 16, 128], strides = [1, 1, 1]} : vector<2x24x128xbf16> to vector<2x16x128xbf16>
    %18 = vector.extract_strided_slice %13 {offsets = [0, 8, 0], sizes = [2, 16, 128], strides = [1, 1, 1]} : vector<2x24x128xbf16> to vector<2x16x128xbf16>
    %19 = tpu.concatenate %14, %15, %16, %17, %18 in 2 : vector<2x16x128xbf16>, vector<2x16x128xbf16>, vector<2x16x128xbf16>, vector<2x16x128xbf16>, vector<2x16x128xbf16> -> vector<2x16x640xbf16>
    %20 = vector.shape_cast %19 : vector<2x16x640xbf16> to vector<32x640xbf16>
    %c0_12 = arith.constant 0 : index
    %c0_13 = arith.constant 0 : index
    %21 = vector.load %arg3[%c0_12, %c0_13] : memref<640x256xbf16, #tpu.memory_space<vmem>>, vector<640x256xbf16>
    %cst = arith.constant dense<0.000000e+00> : vector<32x256xf32>
    %22 = tpu.matmul %20, %21, %cst {dimension_numbers = #tpu.dot_dimension_numbers<[1], [0], [0], [1], [0, 0, 1, 1], [], []>} : vector<32x640xbf16>, vector<640x256xbf16>, vector<32x256xf32> -> vector<32x256xf32>
    %c0_14 = arith.constant 0 : index
    %c0_15 = arith.constant 0 : index
    %23 = vector.load %arg4[%c0_14, %c0_15] : memref<1x256xf32, #tpu.memory_space<vmem>>, vector<1x256xf32>
    %24 = vector.broadcast %23 : vector<1x256xf32> to vector<32x256xf32>
    %25 = arith.addf %22, %24 : vector<32x256xf32>
    %26 = vector.extract_strided_slice %25 {offsets = [0, 0], sizes = [32, 128], strides = [1, 1]} : vector<32x256xf32> to vector<32x128xf32>
    %27 = vector.extract_strided_slice %25 {offsets = [0, 128], sizes = [32, 128], strides = [1, 1]} : vector<32x256xf32> to vector<32x128xf32>
    %28 = arith.negf %27 : vector<32x128xf32>
    %29 = math.exp %28 : vector<32x128xf32>
    %cst_16 = arith.constant 1.000000e+00 : f32
    %30 = vector.broadcast %cst_16 : f32 to vector<32x128xf32>
    %31 = arith.addf %30, %29 : vector<32x128xf32>
    %32 = arith.divf %30, %31 : vector<32x128xf32>
    %33 = arith.mulf %26, %32 : vector<32x128xf32>
    %34 = vector.shape_cast %33 : vector<32x128xf32> to vector<2x16x128xf32>
    %c0_i32_17 = arith.constant 0 : i32
    %35 = arith.cmpi eq, %arg1, %c0_i32_17 : i32
    %c0_i32_18 = arith.constant 0 : i32
    %36 = arith.cmpi sge, %arg1, %c0_i32_18 : i32
    %37 = arith.ori %35, %36 : i1
    %38 = arith.extui %37 : i1 to i32
    %c0_i32_19 = arith.constant 0 : i32
    %39 = arith.cmpi ne, %38, %c0_i32_19 : i32
    scf.if %39 {
      %c16_i32 = arith.constant 16 : i32
      %46 = arith.muli %arg1, %c16_i32 : i32
      %c2_i32 = arith.constant 2 : i32
      %47 = arith.subi %46, %c2_i32 : i32
      %48 = tpu.iota {dimensions = array<i32: 1>} : vector<1x16x1xi32>
      %49 = vector.broadcast %47 : i32 to vector<1x16x1xi32>
      %50 = arith.addi %49, %48 : vector<1x16x1xi32>
      %c0_i32_23 = arith.constant 0 : i32
      %51 = vector.broadcast %c0_i32_23 : i32 to vector<1x16x1xi32>
      %52 = arith.cmpi sge, %50, %51 : vector<1x16x1xi32>
      %c8_i32 = arith.constant 8 : i32
      %53 = vector.broadcast %c8_i32 : i32 to vector<1x16x1xi32>
      %54 = arith.cmpi slt, %50, %53 : vector<1x16x1xi32>
      %55 = arith.andi %52, %54 : vector<1x16x1xi1>
      %cst_24 = arith.constant 0xFF800000 : f32
      %56 = vector.shape_cast %55 : vector<1x16x1xi1> to vector<1x16x1xi1>
      %57 = vector.broadcast %56 : vector<1x16x1xi1> to vector<2x16x128xi1>
      %58 = vector.broadcast %cst_24 : f32 to vector<2x16x128xf32>
      %59 = arith.select %57, %34, %58 : vector<2x16x128xi1>, vector<2x16x128xf32>
      %c0_25 = arith.constant 0 : index
      %c0_26 = arith.constant 0 : index
      %60 = vector.load %arg7[%c0_25, %c0_26] : memref<2x128xf32, #tpu.memory_space<vmem>>, vector<2x128xf32>
      %cst_27 = arith.constant dense<0xFF800000> : vector<2x128xf32>
      %61 = vector.multi_reduction <maximumf>, %59, %cst_27 [1] : vector<2x16x128xf32> to vector<2x128xf32>
      %62 = arith.maximumf %60, %61 : vector<2x128xf32>
      %c0_28 = arith.constant 0 : index
      %c0_29 = arith.constant 0 : index
      %63 = vector.load %arg7[%c0_28, %c0_29] : memref<2x128xf32, #tpu.memory_space<vmem>>, vector<2x128xf32>
      tpu.vector_store %arg7[%c0_28, %c0_29], %62 {strides = array<i32>} : memref<2x128xf32, #tpu.memory_space<vmem>>, vector<2x128xf32>,
    } else {
    }
    %true = arith.constant true
    %40 = arith.xori %37, %true : i1
    %41 = arith.extui %40 : i1 to i32
    %c0_i32_20 = arith.constant 0 : i32
    %42 = arith.cmpi ne, %41, %c0_i32_20 : i32
    scf.if %42 {
      %c0_23 = arith.constant 0 : index
      %c0_24 = arith.constant 0 : index
      %46 = vector.load %arg7[%c0_23, %c0_24] : memref<2x128xf32, #tpu.memory_space<vmem>>, vector<2x128xf32>
      %cst_25 = arith.constant dense<0xFF800000> : vector<2x128xf32>
      %47 = vector.multi_reduction <maximumf>, %34, %cst_25 [1] : vector<2x16x128xf32> to vector<2x128xf32>
      %48 = arith.maximumf %46, %47 : vector<2x128xf32>
      %c0_26 = arith.constant 0 : index
      %c0_27 = arith.constant 0 : index
      %49 = vector.load %arg7[%c0_26, %c0_27] : memref<2x128xf32, #tpu.memory_space<vmem>>, vector<2x128xf32>
      tpu.vector_store %arg7[%c0_26, %c0_27], %48 {strides = array<i32>} : memref<2x128xf32, #tpu.memory_space<vmem>>, vector<2x128xf32>,
    } else {
    }
    %c0_i32_21 = arith.constant 0 : i32
    %43 = arith.cmpi eq, %arg1, %c0_i32_21 : i32
    %44 = arith.extui %43 : i1 to i32
    %c0_i32_22 = arith.constant 0 : i32
    %45 = arith.cmpi ne, %44, %c0_i32_22 : i32
    scf.if %45 {
      %c0_23 = arith.constant 0 : index
      %c0_24 = arith.constant 0 : index
      %46 = vector.load %arg7[%c0_23, %c0_24] : memref<2x128xf32, #tpu.memory_space<vmem>>, vector<2x128xf32>
      %c0_25 = arith.constant 0 : index
      %c0_26 = arith.constant 0 : index
      %47 = vector.load %arg5[%c0_25, %c0_26] : memref<2x128xf32, #tpu.memory_space<vmem>>, vector<2x128xf32>
      tpu.vector_store %arg5[%c0_25, %c0_26], %46 {strides = array<i32>} : memref<2x128xf32, #tpu.memory_space<vmem>>, vector<2x128xf32>,
    } else {
    }
    return
  }
  func.func @transform_0(%arg0: i32, %arg1: i32) -> (i32, i32, i32) {
    %c0_i32 = arith.constant 0 : i32
    %0 = arith.minsi %arg1, %c0_i32 : i32
    %c0_i32_0 = arith.constant 0 : i32
    %c0_i32_1 = arith.constant 0 : i32
    return %arg0, %0, %c0_i32_0 : i32, i32, i32
  }
  func.func @transform_1(%arg0: i32, %arg1: i32) -> (i32, i32) {
    %c0_i32 = arith.constant 0 : i32
    %c0_i32_0 = arith.constant 0 : i32
    %c0_i32_1 = arith.constant 0 : i32
    return %c0_i32, %c0_i32_0 : i32, i32
  }
  func.func @transform_2(%arg0: i32, %arg1: i32) -> (i32, i32) {
    %c0_i32 = arith.constant 0 : i32
    %c0_i32_0 = arith.constant 0 : i32
    %c0_i32_1 = arith.constant 0 : i32
    return %c0_i32, %c0_i32_0 : i32, i32
  }
  func.func @transform_3(%arg0: i32, %arg1: i32) -> (i32, i32) {
    %c0_i32 = arith.constant 0 : i32
    %c0_i32_0 = arith.constant 0 : i32
    return %arg0, %c0_i32 : i32, i32
  }
}

</mosaic_0001>

<llo_original>
// kernel: tpu_custom_call.1
$region0: #{tpu_custom_call.1}
  #allocation0 [shape = 'u32[]', space=smem, size = 0x4, offset = 0x4, fixed_abs, tag = 'smem constant byte address 0x4 - core index']
  #allocation1 [shape = 'u32[72,128]{1,0:T(1,128)}', space=vmem, size = 0x9000, scoped, tag = 'internal scratch']
  #allocation2 [shape = 'bf16[2,24,128]{2,1,0:T(8,128)(2,1)}', space=vmem, size = 0x3000, scoped, tag = 'scratch operand']
  #allocation3 [shape = 'f32[2,128]{1,0:T(2,128)}', space=vmem, size = 0x400, scoped, tag = 'scratch operand']
  #allocation11 [shape = 's32[]', space=sflag, size = 0x4, offset = 0, fixed_abs, tag = 'sflag constant byte address 0x0 - dummy sync flag']
  %s0 = inlined_call_operand.hbm [shape: bf16[2,8,128], index: 0, kind: input, shape index: {}]
  %s1 = inlined_call_operand.hbm [shape: bf16[640,256], index: 1, kind: input, shape index: {}]
  %s2 = inlined_call_operand.hbm [shape: f32[1,256], index: 2, kind: input, shape index: {}]
  %s3 = inlined_call_operand.hbm [shape: f32[2,128], index: 3, kind: output, shape index: {}]
  %s4 = sld [smem:[#allocation0]]
  $region62: #{tpu_custom_call.1} parent=0
    _
  %s6 = ssub.s32 1, %s4
  %s7 = scalar_select 0, %s6, %s4
  $region1: #{tpu_custom_call.1} parent=0
    #allocation4 [shape = 'u8[8192]{0}', space=vmem, size = 0x2000, scoped, tag = 'input window, operand 0, single buffered']
    #allocation5 [shape = 's32[1]{0}', space=sflag, size = 0x4, scoped, tag = 'scoped memory for tpu_custom_call.1']
    #allocation6 [shape = 's32[1]{0}', space=sflag, size = 0x4, scoped, tag = 'scoped memory for tpu_custom_call.1']
    #allocation7 [shape = 'u8[327680]{0}', space=vmem, size = 0x50000, scoped, tag = 'input window, operand 1, single buffered']
    #allocation8 [shape = 's32[1]{0}', space=sflag, size = 0x4, scoped, tag = 'scoped memory for tpu_custom_call.1']
    #allocation9 [shape = 'u8[1024]{0}', space=vmem, size = 0x400, scoped, tag = 'input window, operand 2, single buffered']
    #allocation10 [shape = 'u8[1024]{0}', space=vmem, size = 0x400, scoped, tag = 'output window, operand 0, single buffered']
    %8 = vsyncpa [#allocation5], 0
    %9 = vsyncpa [#allocation8], 0
    %10 = vsyncpa [#allocation6], 0
    // Predicated region
    $region2: #{tpu_custom_call.1} parent=1 // pred_check
      _
    $region3: #{tpu_custom_call.1} parent=1 // pred_check_branch
      %12 = sbr.rel (0) target = $region5
    $region4: #{tpu_custom_call.1} parent=1 // pred_region
      #allocation12 [shape = 'u32[6]{0}', space=smem, size = 0x18, scoped, tag = 'DMA stride descriptor']
      %14 = vsyncadd [#allocation5], 128
      %s16 = sshll.u32 1, 14
      %s17 = sxor.u32 4294967295, %s16
      %s19 = sld [smem:[#allocation0]]
      %s20 = sadd.s32 2, %s19
      %s22 = sshll.u32 7, 26
      %s23 = sxor.u32 4294967295, %s22
      %s24 = sand.u32 0, %s23
      %s25 = sshll.u32 %s20, 26
      %s26 = sor.u32 %s24, %s25
      %s27 = sshll.u32 %s0, 4
      %s28 = int_to_ptr.hbm [resolvable:$true] %s27
      %s29 = sshll.u32 [#allocation4], 4
      %s30 = int_to_ptr.vmem [resolvable:$true] %s29
      %36 = sst [smem:[#allocation12]] 64
      %s37 = scalar_lea.smem [#allocation12], 1
      %38 = sst [smem:[%s37]] 128
      %s39 = scalar_lea.smem [#allocation12], 2
      %40 = sst [smem:[%s39]] 1
      %s41 = scalar_lea.smem [#allocation12], 3
      %42 = sst [smem:[%s41]] 64
      %s43 = scalar_lea.smem [#allocation12], 4
      %44 = sst [smem:[%s43]] 64
      %s45 = scalar_lea.smem [#allocation12], 5
      %46 = sst [smem:[%s45]] 4
      %48 = dma.general %s28, 128, %s30, [#allocation5], [#allocation11], [#allocation12], %s26, 0
    $region5: #{tpu_custom_call.1} parent=1 // pred_fallthru
      _
    // Predicated region
    $region6: #{tpu_custom_call.1} parent=1 // pred_check
      _
    $region7: #{tpu_custom_call.1} parent=1 // pred_check_branch
      %50 = sbr.rel (0) target = $region9
    $region8: #{tpu_custom_call.1} parent=1 // pred_region
      %52 = vsyncadd [#allocation8], 0
      %s53 = sshll.u32 %s1, 4
      %s54 = int_to_ptr.hbm [resolvable:$true] %s53
      %s55 = sshll.u32 [#allocation7], 4
      %s56 = int_to_ptr.vmem [resolvable:$true] %s55
      %61 = dma.hbm_to_vmem [thread:$0]  %s54, 10240, %s56, [#allocation8], 128, 128, 8
    $region9: #{tpu_custom_call.1} parent=1 // pred_fallthru
      _
    // Predicated region
    $region10: #{tpu_custom_call.1} parent=1 // pred_check
      _
    $region11: #{tpu_custom_call.1} parent=1 // pred_check_branch
      %63 = sbr.rel (0) target = $region13
    $region12: #{tpu_custom_call.1} parent=1 // pred_region
      %65 = vsyncadd [#allocation8], 0
      %s67 = sshll.u32 %s2, 4
      %s68 = int_to_ptr.hbm [resolvable:$true] %s67
      %s69 = sshll.u32 [#allocation9], 4
      %s70 = int_to_ptr.vmem [resolvable:$true] %s69
      %72 = dma.hbm_to_vmem [thread:$0]  %s68, 32, %s70, [#allocation8]
    $region13: #{tpu_custom_call.1} parent=1 // pred_fallthru
      _
    // Predicated region
    $region14: #{tpu_custom_call.1} parent=1 // pred_check
      _
    $region15: #{tpu_custom_call.1} parent=1 // pred_check_branch
      %74 = sbr.rel (0) target = $region17
    $region16: #{tpu_custom_call.1} parent=1 // pred_region
      %76 = dma.done [#allocation5], 256
    $region17: #{tpu_custom_call.1} parent=1 // pred_fallthru
      _
    // Predicated region
    $region18: #{tpu_custom_call.1} parent=1 // pred_check
      _
    $region19: #{tpu_custom_call.1} parent=1 // pred_check_branch
      %78 = sbr.rel (0) target = $region21
    $region20: #{tpu_custom_call.1} parent=1 // pred_region
      %80 = dma.done [#allocation8], 10240
    $region21: #{tpu_custom_call.1} parent=1 // pred_fallthru
      _
    // Predicated region
    $region22: #{tpu_custom_call.1} parent=1 // pred_check
      _
    $region23: #{tpu_custom_call.1} parent=1 // pred_check_branch
      %82 = sbr.rel (0) target = $region25
    $region24: #{tpu_custom_call.1} parent=1 // pred_region
      %84 = dma.done [#allocation8], 32
    $region25: #{tpu_custom_call.1} parent=1 // pred_fallthru
      _
    %p86 = scmp.eq.s32.totalorder 0, 0
    // Predicated region
    $region26: #{tpu_custom_call.1} parent=1 // pred_check
      %p87 = pneg %p86
    $region27: #{tpu_custom_call.1} parent=1 // pred_check_branch
      %89 = sbr.rel (%p87) target = $region29
    $region28: #{tpu_custom_call.1} parent=1 // pred_region
      %90 = vst [vmem:[#allocation2] sm:$0xc] 0
      %91 = vst [vmem:[#allocation2 + $0xc] sm:$0xc] 0
      %92 = vst [vmem:[#allocation3] sm:$0x3] -inf
    $region29: #{tpu_custom_call.1} parent=1 // pred_fallthru
      _
    %p93 = scmp.gt.s32.totalorder 0, 0
    // Predicated region
    $region30: #{tpu_custom_call.1} parent=1 // pred_check
      %p94 = pneg %p93
    $region31: #{tpu_custom_call.1} parent=1 // pred_check_branch
      %96 = sbr.rel (%p94) target = $region33
    $region32: #{tpu_custom_call.1} parent=1 // pred_region
      %v97 = vld [vmem:[#allocation2 + $0x8] sm:$0xc]
      %v98 = vld [vmem:[#allocation2 + $0x14] sm:$0xc]
      %99 = vst [vmem:[#allocation2] sm:$0xc] %v97
      %100 = vst [vmem:[#allocation2 + $0xc] sm:$0xc] %v98
    $region33: #{tpu_custom_call.1} parent=1 // pred_fallthru
      _
    %v101 = vld [vmem:[#allocation4] sm:$0xf]
    %v102 = vld [vmem:[#allocation4 + $0x4] sm:$0xf]
    %v103 = vld [vmem:[#allocation4 + $0x8] sm:$0xf]
    %v104 = vld [vmem:[#allocation4 + $0xc] sm:$0xf]
    %p105 = scmp.lt.s32.totalorder 0, 0
    // Predicated region
    $region34: #{tpu_custom_call.1} parent=1 // pred_check
      %p106 = pneg %p105
    $region35: #{tpu_custom_call.1} parent=1 // pred_check_branch
      %108 = sbr.rel (%p106) target = $region37
    $region36: #{tpu_custom_call.1} parent=1 // pred_region
      %109 = vst [vmem:[#allocation2 + $0x4] sm:$0xf] %v101
      %110 = vst [vmem:[#allocation2 + $0x8] sm:$0xf] %v102
      %111 = vst [vmem:[#allocation2 + $0x10] sm:$0xf] %v103
      %112 = vst [vmem:[#allocation2 + $0x14] sm:$0xf] %v104
    $region37: #{tpu_custom_call.1} parent=1 // pred_fallthru
      _
    %p113 = scmp.ge.s32.totalorder 0, 0
    // Predicated region
    $region38: #{tpu_custom_call.1} parent=1 // pred_check
      %p114 = pneg %p113
    $region39: #{tpu_custom_call.1} parent=1 // pred_check_branch
      %116 = sbr.rel (%p114) target = $region41
    $region40: #{tpu_custom_call.1} parent=1 // pred_region
      %s117 = smul.u32 0, 16
      %v118 = vlaneseq
      %v119 = vshrl.u32 %v118, 7
      %v120 = vadd.s32 %v119, 8
      %v121 = vstv %s117
      %v122 = vadd.s32 %v121, %v119
      %v123 = vadd.s32 %v121, %v120
      %vm124 = vcmp.lt.s32.totalorder %v122, 8
      %vm125 = vcmp.lt.s32.totalorder %v123, 8
      %v126 = vsel %vm124, 1, 0
      %v127 = vsel %vm125, 1, 0
      %vm128 = vcmp.eq.s32.totalorder %v126, 1
      %vm129 = vcmp.eq.s32.totalorder %v127, 1
      %vm130 = vmpackc.low %vm128, %vm128
      %vm131 = vmpackc.low %vm129, %vm129
      %v132 = vsel %vm130, %v101, 0
      %v133 = vsel %vm131, %v102, 0
      %v134 = vsel %vm130, %v103, 0
      %v135 = vsel %vm131, %v104, 0
      %136 = vst [vmem:[#allocation2 + $0x4] sm:$0xf] %v132
      %137 = vst [vmem:[#allocation2 + $0x8] sm:$0xf] %v133
      %138 = vst [vmem:[#allocation2 + $0x10] sm:$0xf] %v134
      %139 = vst [vmem:[#allocation2 + $0x14] sm:$0xf] %v135
    $region41: #{tpu_custom_call.1} parent=1 // pred_fallthru
      _
    %v140 = vld [vmem:[#allocation2] sm:$0xf]
    %v141 = vld [vmem:[#allocation2 + $0x4] sm:$0xf]
    %v142 = vld [vmem:[#allocation2 + $0x8] sm:$0xf]
    %v143 = vld [vmem:[#allocation2 + $0xc] sm:$0xf]
    %v144 = vld [vmem:[#allocation2 + $0x10] sm:$0xf]
    %v145 = vld [vmem:[#allocation2 + $0x14] sm:$0xf]
    %v152 = vunpack.c.l.b16 %v140
    %v153 = vunpack.c.l.b16 %v141
    %v154 = vunpack.c.l.b16 %v142
    %v155 = vunpack.c.l.b16 %v143
    %v156 = vunpack.c.l.b16 %v144
    %v157 = vunpack.c.l.b16 %v145
    %v158 = vpack.c.b16 %v153, %v152
    %v159 = vpack.c.b16 %v154, %v154
    %v160 = vpack.c.b16 %v156, %v155
    %v161 = vpack.c.b16 %v157, %v157
    %vm162 = vsmask.f32 7424
    %v164 = vshrl.u32 %v158, 16
    %v166 = vshll.u32 %v158, 16
    %v168 = vrot.slane %v166, 1
    %v169 = vor.u32 %v164, %v168
    %v171 = vshll.u32 %v159, 16
    %v173 = vrot.slane %v171, 1
    %v174 = vsel %vm162, %v169, %v173
    %v175 = vshrl.u32 %v159, 16
    %v177 = vor.u32 %v175, %v173
    %v179 = vshrl.u32 %v160, 16
    %v181 = vshll.u32 %v160, 16
    %v183 = vrot.slane %v181, 1
    %v184 = vor.u32 %v179, %v183
    %v186 = vshll.u32 %v161, 16
    %v188 = vrot.slane %v186, 1
    %v189 = vsel %vm162, %v184, %v188
    %v190 = vshrl.u32 %v161, 16
    %v192 = vor.u32 %v190, %v188
    %vm193 = vcmask 1046528
    %v194 = vrot.slane %v158, 1
    %v195 = vrot.slane %v159, 1
    %v196 = vsel %vm193, %v194, %v195
    %v197 = vrot.slane %v160, 1
    %v198 = vrot.slane %v161, 1
    %v199 = vsel %vm193, %v197, %v198
    %vm200 = vsmask.f32 6400
    %v201 = vrot.slane %v164, 1
    %v202 = vrot.slane %v166, 2
    %v203 = vor.u32 %v201, %v202
    %v204 = vrot.slane %v175, 1
    %v205 = vrot.slane %v171, 2
    %v206 = vor.u32 %v204, %v205
    %v207 = vsel %vm200, %v203, %v206
    %v208 = vrot.slane %v179, 1
    %v209 = vrot.slane %v181, 2
    %v210 = vor.u32 %v208, %v209
    %v211 = vrot.slane %v190, 1
    %v212 = vrot.slane %v186, 2
    %v213 = vor.u32 %v211, %v212
    %v214 = vsel %vm200, %v210, %v213
    %v215 = vpack.c.b16 %v154, %v153
    %v216 = vpack.c.b16 %v157, %v156
    %v217 = vrot.slane %v215, 6
    %v218 = vrot.slane %v216, 6
    %vm219 = vcmask 1045504
    %v220 = vrot.slane %v158, 2
    %v221 = vrot.slane %v159, 2
    %v222 = vsel %vm219, %v220, %v221
    %v223 = vrot.slane %v174, 2
    %v224 = vrot.slane %v177, 2
    %v225 = vsel %vm219, %v223, %v224
    %v226 = vrot.slane %v196, 2
    %v227 = vrot.slane %v195, 2
    %v228 = vsel %vm219, %v226, %v227
    %v229 = vrot.slane %v207, 2
    %v230 = vrot.slane %v206, 2
    %v231 = vsel %vm219, %v229, %v230
    %v232 = vrot.slane %v217, 2
    %v233 = vsel %vm219, %v232, %v232
    %v234 = vrot.slane %v160, 2
    %v235 = vrot.slane %v161, 2
    %v236 = vsel %vm219, %v234, %v235
    %v237 = vrot.slane %v189, 2
    %v238 = vrot.slane %v192, 2
    %v239 = vsel %vm219, %v237, %v238
    %v240 = vrot.slane %v199, 2
    %v241 = vrot.slane %v198, 2
    %v242 = vsel %vm219, %v240, %v241
    %v243 = vrot.slane %v214, 2
    %v244 = vrot.slane %v213, 2
    %v245 = vsel %vm219, %v243, %v244
    %v246 = vrot.slane %v218, 2
    %v247 = vsel %vm219, %v246, %v246
    %v258 = vld [vmem:[#allocation7] sm:$0xff]
    %v259 = vld [vmem:[#allocation7 + $0x8] sm:$0xff]
    %v260 = vld [vmem:[#allocation7 + $0x10] sm:$0xff]
    %v261 = vld [vmem:[#allocation7 + $0x18] sm:$0xff]
    %v262 = vld [vmem:[#allocation7 + $0x20] sm:$0xff]
    %v263 = vld [vmem:[#allocation7 + $0x28] sm:$0xff]
    %v264 = vld [vmem:[#allocation7 + $0x30] sm:$0xff]
    %v265 = vld [vmem:[#allocation7 + $0x38] sm:$0xff]
    %v266 = vld [vmem:[#allocation7 + $0x40] sm:$0xff]
    %v267 = vld [vmem:[#allocation7 + $0x48] sm:$0xff]
    %v268 = vld [vmem:[#allocation7 + $0x50] sm:$0xff]
    %v269 = vld [vmem:[#allocation7 + $0x58] sm:$0xff]
    %v270 = vld [vmem:[#allocation7 + $0x60] sm:$0xff]
    %v271 = vld [vmem:[#allocation7 + $0x68] sm:$0xff]
    %v272 = vld [vmem:[#allocation7 + $0x70] sm:$0xff]
    %v273 = vld [vmem:[#allocation7 + $0x78] sm:$0xff]
    %v274 = vld [vmem:[#allocation7 + $0x80] sm:$0xff]
    %v275 = vld [vmem:[#allocation7 + $0x88] sm:$0xff]
    %v276 = vld [vmem:[#allocation7 + $0x90] sm:$0xff]
    %v277 = vld [vmem:[#allocation7 + $0x98] sm:$0xff]
    %v278 = vld [vmem:[#allocation7 + $0xa0] sm:$0xff]
    %v279 = vld [vmem:[#allocation7 + $0xa8] sm:$0xff]
    %v280 = vld [vmem:[#allocation7 + $0xb0] sm:$0xff]
    %v281 = vld [vmem:[#allocation7 + $0xb8] sm:$0xff]
    %v282 = vld [vmem:[#allocation7 + $0xc0] sm:$0xff]
    %v283 = vld [vmem:[#allocation7 + $0xc8] sm:$0xff]
    %v284 = vld [vmem:[#allocation7 + $0xd0] sm:$0xff]
    %v285 = vld [vmem:[#allocation7 + $0xd8] sm:$0xff]
    %v286 = vld [vmem:[#allocation7 + $0xe0] sm:$0xff]
    %v287 = vld [vmem:[#allocation7 + $0xe8] sm:$0xff]
    %v288 = vld [vmem:[#allocation7 + $0xf0] sm:$0xff]
    %v289 = vld [vmem:[#allocation7 + $0xf8] sm:$0xff]
    %v290 = vld [vmem:[#allocation7 + $0x100] sm:$0xff]
    %v291 = vld [vmem:[#allocation7 + $0x108] sm:$0xff]
    %v292 = vld [vmem:[#allocation7 + $0x110] sm:$0xff]
    %v293 = vld [vmem:[#allocation7 + $0x118] sm:$0xff]
    %v294 = vld [vmem:[#allocation7 + $0x120] sm:$0xff]
    %v295 = vld [vmem:[#allocation7 + $0x128] sm:$0xff]
    %v296 = vld [vmem:[#allocation7 + $0x130] sm:$0xff]
    %v297 = vld [vmem:[#allocation7 + $0x138] sm:$0xff]
    %v298 = vld [vmem:[#allocation7 + $0x140] sm:$0xff]
    %v299 = vld [vmem:[#allocation7 + $0x148] sm:$0xff]
    %v300 = vld [vmem:[#allocation7 + $0x150] sm:$0xff]
    %v301 = vld [vmem:[#allocation7 + $0x158] sm:$0xff]
    %v302 = vld [vmem:[#allocation7 + $0x160] sm:$0xff]
    %v303 = vld [vmem:[#allocation7 + $0x168] sm:$0xff]
    %v304 = vld [vmem:[#allocation7 + $0x170] sm:$0xff]
    %v305 = vld [vmem:[#allocation7 + $0x178] sm:$0xff]
    %v306 = vld [vmem:[#allocation7 + $0x180] sm:$0xff]
    %v307 = vld [vmem:[#allocation7 + $0x188] sm:$0xff]
    %v308 = vld [vmem:[#allocation7 + $0x190] sm:$0xff]
    %v309 = vld [vmem:[#allocation7 + $0x198] sm:$0xff]
    %v310 = vld [vmem:[#allocation7 + $0x1a0] sm:$0xff]
    %v311 = vld [vmem:[#allocation7 + $0x1a8] sm:$0xff]
    %v312 = vld [vmem:[#allocation7 + $0x1b0] sm:$0xff]
    %v313 = vld [vmem:[#allocation7 + $0x1b8] sm:$0xff]
    %v314 = vld [vmem:[#allocation7 + $0x1c0] sm:$0xff]
    %v315 = vld [vmem:[#allocation7 + $0x1c8] sm:$0xff]
    %v316 = vld [vmem:[#allocation7 + $0x1d0] sm:$0xff]
    %v317 = vld [vmem:[#allocation7 + $0x1d8] sm:$0xff]
    %v318 = vld [vmem:[#allocation7 + $0x1e0] sm:$0xff]
    %v319 = vld [vmem:[#allocation7 + $0x1e8] sm:$0xff]
    %v320 = vld [vmem:[#allocation7 + $0x1f0] sm:$0xff]
    %v321 = vld [vmem:[#allocation7 + $0x1f8] sm:$0xff]
    %v322 = vld [vmem:[#allocation7 + $0x200] sm:$0xff]
    %v323 = vld [vmem:[#allocation7 + $0x208] sm:$0xff]
    %v324 = vld [vmem:[#allocation7 + $0x210] sm:$0xff]
    %v325 = vld [vmem:[#allocation7 + $0x218] sm:$0xff]
    %v326 = vld [vmem:[#allocation7 + $0x220] sm:$0xff]
    %v327 = vld [vmem:[#allocation7 + $0x228] sm:$0xff]
    %v328 = vld [vmem:[#allocation7 + $0x230] sm:$0xff]
    %v329 = vld [vmem:[#allocation7 + $0x238] sm:$0xff]
    %v330 = vld [vmem:[#allocation7 + $0x240] sm:$0xff]
    %v331 = vld [vmem:[#allocation7 + $0x248] sm:$0xff]
    %v332 = vld [vmem:[#allocation7 + $0x250] sm:$0xff]
    %v333 = vld [vmem:[#allocation7 + $0x258] sm:$0xff]
    %v334 = vld [vmem:[#allocation7 + $0x260] sm:$0xff]
    %v335 = vld [vmem:[#allocation7 + $0x268] sm:$0xff]
    %v336 = vld [vmem:[#allocation7 + $0x270] sm:$0xff]
    %v337 = vld [vmem:[#allocation7 + $0x278] sm:$0xff]
    %v338 = vld [vmem:[#allocation9] sm:$0x3]
    %v340 = vperm.slane %v338, 0
    %v341 = vperm.slane %v338, 1
    %v424 = vunpack.c.l.b16 %v258
    %v425 = vunpack.c.h.b16 %v258
    %v426 = vunpack.c.l.b16 %v259
    %v427 = vunpack.c.h.b16 %v259
    %v428 = vunpack.c.l.b16 %v260
    %v429 = vunpack.c.h.b16 %v260
    %v430 = vunpack.c.l.b16 %v261
    %v431 = vunpack.c.h.b16 %v261
    %v432 = vunpack.c.l.b16 %v262
    %v433 = vunpack.c.h.b16 %v262
    %v434 = vunpack.c.l.b16 %v263
    %v435 = vunpack.c.h.b16 %v263
    %v436 = vunpack.c.l.b16 %v264
    %v437 = vunpack.c.h.b16 %v264
    %v438 = vunpack.c.l.b16 %v265
    %v439 = vunpack.c.h.b16 %v265
    %v440 = vunpack.c.l.b16 %v266
    %v441 = vunpack.c.h.b16 %v266
    %v442 = vunpack.c.l.b16 %v267
    %v443 = vunpack.c.h.b16 %v267
    %v444 = vunpack.c.l.b16 %v268
    %v445 = vunpack.c.h.b16 %v268
    %v446 = vunpack.c.l.b16 %v269
    %v447 = vunpack.c.h.b16 %v269
    %v448 = vunpack.c.l.b16 %v270
    %v449 = vunpack.c.h.b16 %v270
    %v450 = vunpack.c.l.b16 %v271
    %v451 = vunpack.c.h.b16 %v271
    %v452 = vunpack.c.l.b16 %v272
    %v453 = vunpack.c.h.b16 %v272
    %v454 = vunpack.c.l.b16 %v273
    %v455 = vunpack.c.h.b16 %v273
    %v456 = vunpack.c.l.b16 %v274
    %v457 = vunpack.c.h.b16 %v274
    %v458 = vunpack.c.l.b16 %v275
    %v459 = vunpack.c.h.b16 %v275
    %v460 = vunpack.c.l.b16 %v276
    %v461 = vunpack.c.h.b16 %v276
    %v462 = vunpack.c.l.b16 %v277
    %v463 = vunpack.c.h.b16 %v277
    %v464 = vunpack.c.l.b16 %v278
    %v465 = vunpack.c.h.b16 %v278
    %v466 = vunpack.c.l.b16 %v279
    %v467 = vunpack.c.h.b16 %v279
    %v468 = vunpack.c.l.b16 %v280
    %v469 = vunpack.c.h.b16 %v280
    %v470 = vunpack.c.l.b16 %v281
    %v471 = vunpack.c.h.b16 %v281
    %v472 = vunpack.c.l.b16 %v282
    %v473 = vunpack.c.h.b16 %v282
    %v474 = vunpack.c.l.b16 %v283
    %v475 = vunpack.c.h.b16 %v283
    %v476 = vunpack.c.l.b16 %v284
    %v477 = vunpack.c.h.b16 %v284
    %v478 = vunpack.c.l.b16 %v285
    %v479 = vunpack.c.h.b16 %v285
    %v480 = vunpack.c.l.b16 %v286
    %v481 = vunpack.c.h.b16 %v286
    %v482 = vunpack.c.l.b16 %v287
    %v483 = vunpack.c.h.b16 %v287
    %v484 = vunpack.c.l.b16 %v288
    %v485 = vunpack.c.h.b16 %v288
    %v486 = vunpack.c.l.b16 %v289
    %v487 = vunpack.c.h.b16 %v289
    %v488 = vunpack.c.l.b16 %v290
    %v489 = vunpack.c.h.b16 %v290
    %v490 = vunpack.c.l.b16 %v291
    %v491 = vunpack.c.h.b16 %v291
    %v492 = vunpack.c.l.b16 %v292
    %v493 = vunpack.c.h.b16 %v292
    %v494 = vunpack.c.l.b16 %v293
    %v495 = vunpack.c.h.b16 %v293
    %v496 = vunpack.c.l.b16 %v294
    %v497 = vunpack.c.h.b16 %v294
    %v498 = vunpack.c.l.b16 %v295
    %v499 = vunpack.c.h.b16 %v295
    %v500 = vunpack.c.l.b16 %v296
    %v501 = vunpack.c.h.b16 %v296
    %v502 = vunpack.c.l.b16 %v297
    %v503 = vunpack.c.h.b16 %v297
    %v504 = vunpack.c.l.b16 %v298
    %v505 = vunpack.c.h.b16 %v298
    %v506 = vunpack.c.l.b16 %v299
    %v507 = vunpack.c.h.b16 %v299
    %v508 = vunpack.c.l.b16 %v300
    %v509 = vunpack.c.h.b16 %v300
    %v510 = vunpack.c.l.b16 %v301
    %v511 = vunpack.c.h.b16 %v301
    %v512 = vunpack.c.l.b16 %v302
    %v513 = vunpack.c.h.b16 %v302
    %v514 = vunpack.c.l.b16 %v303
    %v515 = vunpack.c.h.b16 %v303
    %v516 = vunpack.c.l.b16 %v304
    %v517 = vunpack.c.h.b16 %v304
    %v518 = vunpack.c.l.b16 %v305
    %v519 = vunpack.c.h.b16 %v305
    %v520 = vunpack.c.l.b16 %v306
    %v521 = vunpack.c.h.b16 %v306
    %v522 = vunpack.c.l.b16 %v307
    %v523 = vunpack.c.h.b16 %v307
    %v524 = vunpack.c.l.b16 %v308
    %v525 = vunpack.c.h.b16 %v308
    %v526 = vunpack.c.l.b16 %v309
    %v527 = vunpack.c.h.b16 %v309
    %v528 = vunpack.c.l.b16 %v310
    %v529 = vunpack.c.h.b16 %v310
    %v530 = vunpack.c.l.b16 %v311
    %v531 = vunpack.c.h.b16 %v311
    %v532 = vunpack.c.l.b16 %v312
    %v533 = vunpack.c.h.b16 %v312
    %v534 = vunpack.c.l.b16 %v313
    %v535 = vunpack.c.h.b16 %v313
    %v536 = vunpack.c.l.b16 %v314
    %v537 = vunpack.c.h.b16 %v314
    %v538 = vunpack.c.l.b16 %v315
    %v539 = vunpack.c.h.b16 %v315
    %v540 = vunpack.c.l.b16 %v316
    %v541 = vunpack.c.h.b16 %v316
    %v542 = vunpack.c.l.b16 %v317
    %v543 = vunpack.c.h.b16 %v317
    %v544 = vunpack.c.l.b16 %v318
    %v545 = vunpack.c.h.b16 %v318
    %v546 = vunpack.c.l.b16 %v319
    %v547 = vunpack.c.h.b16 %v319
    %v548 = vunpack.c.l.b16 %v320
    %v549 = vunpack.c.h.b16 %v320
    %v550 = vunpack.c.l.b16 %v321
    %v551 = vunpack.c.h.b16 %v321
    %v552 = vunpack.c.l.b16 %v322
    %v553 = vunpack.c.h.b16 %v322
    %v554 = vunpack.c.l.b16 %v323
    %v555 = vunpack.c.h.b16 %v323
    %v556 = vunpack.c.l.b16 %v324
    %v557 = vunpack.c.h.b16 %v324
    %v558 = vunpack.c.l.b16 %v325
    %v559 = vunpack.c.h.b16 %v325
    %v560 = vunpack.c.l.b16 %v326
    %v561 = vunpack.c.h.b16 %v326
    %v562 = vunpack.c.l.b16 %v327
    %v563 = vunpack.c.h.b16 %v327
    %v564 = vunpack.c.l.b16 %v328
    %v565 = vunpack.c.h.b16 %v328
    %v566 = vunpack.c.l.b16 %v329
    %v567 = vunpack.c.h.b16 %v329
    %v568 = vunpack.c.l.b16 %v330
    %v569 = vunpack.c.h.b16 %v330
    %v570 = vunpack.c.l.b16 %v331
    %v571 = vunpack.c.h.b16 %v331
    %v572 = vunpack.c.l.b16 %v332
    %v573 = vunpack.c.h.b16 %v332
    %v574 = vunpack.c.l.b16 %v333
    %v575 = vunpack.c.h.b16 %v333
    %v576 = vunpack.c.l.b16 %v334
    %v577 = vunpack.c.h.b16 %v334
    %v578 = vunpack.c.l.b16 %v335
    %v579 = vunpack.c.h.b16 %v335
    %v580 = vunpack.c.l.b16 %v336
    %v581 = vunpack.c.h.b16 %v336
    %v582 = vunpack.c.l.b16 %v337
    %v583 = vunpack.c.h.b16 %v337
    %v584 = vpack.c.b16 %v426, %v424
    %v585 = vpack.c.b16 %v427, %v425
    %v586 = vpack.c.b16 %v430, %v428
    %v587 = vpack.c.b16 %v431, %v429
    %v588 = vpack.c.b16 %v434, %v432
    %v589 = vpack.c.b16 %v435, %v433
    %v590 = vpack.c.b16 %v438, %v436
    %v591 = vpack.c.b16 %v439, %v437
    %v592 = vpack.c.b16 %v442, %v440
    %v593 = vpack.c.b16 %v443, %v441
    %v594 = vpack.c.b16 %v446, %v444
    %v595 = vpack.c.b16 %v447, %v445
    %v596 = vpack.c.b16 %v450, %v448
    %v597 = vpack.c.b16 %v451, %v449
    %v598 = vpack.c.b16 %v454, %v452
    %v599 = vpack.c.b16 %v455, %v453
    %v600 = vpack.c.b16 %v458, %v456
    %v601 = vpack.c.b16 %v459, %v457
    %v602 = vpack.c.b16 %v462, %v460
    %v603 = vpack.c.b16 %v463, %v461
    %v604 = vpack.c.b16 %v466, %v464
    %v605 = vpack.c.b16 %v467, %v465
    %v606 = vpack.c.b16 %v470, %v468
    %v607 = vpack.c.b16 %v471, %v469
    %v608 = vpack.c.b16 %v474, %v472
    %v609 = vpack.c.b16 %v475, %v473
    %v610 = vpack.c.b16 %v478, %v476
    %v611 = vpack.c.b16 %v479, %v477
    %v612 = vpack.c.b16 %v482, %v480
    %v613 = vpack.c.b16 %v483, %v481
    %v614 = vpack.c.b16 %v486, %v484
    %v615 = vpack.c.b16 %v487, %v485
    %v616 = vpack.c.b16 %v490, %v488
    %v617 = vpack.c.b16 %v491, %v489
    %v618 = vpack.c.b16 %v494, %v492
    %v619 = vpack.c.b16 %v495, %v493
    %v620 = vpack.c.b16 %v498, %v496
    %v621 = vpack.c.b16 %v499, %v497
    %v622 = vpack.c.b16 %v502, %v500
    %v623 = vpack.c.b16 %v503, %v501
    %v624 = vpack.c.b16 %v506, %v504
    %v625 = vpack.c.b16 %v507, %v505
    %v626 = vpack.c.b16 %v510, %v508
    %v627 = vpack.c.b16 %v511, %v509
    %v628 = vpack.c.b16 %v514, %v512
    %v629 = vpack.c.b16 %v515, %v513
    %v630 = vpack.c.b16 %v518, %v516
    %v631 = vpack.c.b16 %v519, %v517
    %v632 = vpack.c.b16 %v522, %v520
    %v633 = vpack.c.b16 %v523, %v521
    %v634 = vpack.c.b16 %v526, %v524
    %v635 = vpack.c.b16 %v527, %v525
    %v636 = vpack.c.b16 %v530, %v528
    %v637 = vpack.c.b16 %v531, %v529
    %v638 = vpack.c.b16 %v534, %v532
    %v639 = vpack.c.b16 %v535, %v533
    %v640 = vpack.c.b16 %v538, %v536
    %v641 = vpack.c.b16 %v539, %v537
    %v642 = vpack.c.b16 %v542, %v540
    %v643 = vpack.c.b16 %v543, %v541
    %v644 = vpack.c.b16 %v546, %v544
    %v645 = vpack.c.b16 %v547, %v545
    %v646 = vpack.c.b16 %v550, %v548
    %v647 = vpack.c.b16 %v551, %v549
    %v648 = vpack.c.b16 %v554, %v552
    %v649 = vpack.c.b16 %v555, %v553
    %v650 = vpack.c.b16 %v558, %v556
    %v651 = vpack.c.b16 %v559, %v557
    %v652 = vpack.c.b16 %v562, %v560
    %v653 = vpack.c.b16 %v563, %v561
    %v654 = vpack.c.b16 %v566, %v564
    %v655 = vpack.c.b16 %v567, %v565
    %v656 = vpack.c.b16 %v570, %v568
    %v657 = vpack.c.b16 %v571, %v569
    %v658 = vpack.c.b16 %v574, %v572
    %v659 = vpack.c.b16 %v575, %v573
    %v660 = vpack.c.b16 %v578, %v576
    %v661 = vpack.c.b16 %v579, %v577
    %v662 = vpack.c.b16 %v582, %v580
    %v663 = vpack.c.b16 %v583, %v581
    %744 = vmatpush.bf16.msra.mxu0 %v598
    %745 = vmatpush.bf16.msra.mxu0 %v596
    %746 = vmatpush.bf16.msra.mxu0 %v594
    %747 = vmatpush.bf16.msra.mxu0 %v592
    %748 = vmatpush.bf16.msra.mxu0 %v590
    %749 = vmatpush.bf16.msra.mxu0 %v588
    %750 = vmatpush.bf16.msra.mxu0 %v586
    %751 = vmatpush.bf16.msra.mxu0 %v584
    %752 = vmatmul.bf16.gmra.mxu0 %v222
    %v753 = vpop.f32.mrf.mxu0
    %v754 = vadd.f32 %v340, %v753
    %v755 = vpop.f32.mrf.mxu0
    %v756 = vadd.f32 %v340, %v755
    %757 = vmatmul.bf16.gmra.mxu0 %v236
    %v758 = vpop.f32.mrf.mxu0
    %v759 = vadd.f32 %v340, %v758
    %v760 = vpop.f32.mrf.mxu0
    %v761 = vadd.f32 %v340, %v760
    %762 = vdwg.mxu0
    %763 = vmatpush.bf16.msra.mxu0 %v614
    %764 = vmatpush.bf16.msra.mxu0 %v612
    %765 = vmatpush.bf16.msra.mxu0 %v610
    %766 = vmatpush.bf16.msra.mxu0 %v608
    %767 = vmatpush.bf16.msra.mxu0 %v606
    %768 = vmatpush.bf16.msra.mxu0 %v604
    %769 = vmatpush.bf16.msra.mxu0 %v602
    %770 = vmatpush.bf16.msra.mxu0 %v600
    %771 = vmatmul.bf16.gmra.mxu0 %v225
    %v772 = vpop.f32.mrf.mxu0
    %v773 = vadd.f32 %v754, %v772
    %v774 = vpop.f32.mrf.mxu0
    %v775 = vadd.f32 %v756, %v774
    %776 = vmatmul.bf16.gmra.mxu0 %v239
    %v777 = vpop.f32.mrf.mxu0
    %v778 = vadd.f32 %v759, %v777
    %v779 = vpop.f32.mrf.mxu0
    %v780 = vadd.f32 %v761, %v779
    %781 = vdwg.mxu0
    %782 = vmatpush.bf16.msra.mxu0 %v630
    %783 = vmatpush.bf16.msra.mxu0 %v628
    %784 = vmatpush.bf16.msra.mxu0 %v626
    %785 = vmatpush.bf16.msra.mxu0 %v624
    %786 = vmatpush.bf16.msra.mxu0 %v622
    %787 = vmatpush.bf16.msra.mxu0 %v620
    %788 = vmatpush.bf16.msra.mxu0 %v618
    %789 = vmatpush.bf16.msra.mxu0 %v616
    %790 = vmatmul.bf16.gmra.mxu0 %v228
    %v791 = vpop.f32.mrf.mxu0
    %v792 = vadd.f32 %v773, %v791
    %v793 = vpop.f32.mrf.mxu0
    %v794 = vadd.f32 %v775, %v793
    %795 = vmatmul.bf16.gmra.mxu0 %v242
    %v796 = vpop.f32.mrf.mxu0
    %v797 = vadd.f32 %v778, %v796
    %v798 = vpop.f32.mrf.mxu0
    %v799 = vadd.f32 %v780, %v798
    %800 = vdwg.mxu0
    %801 = vmatpush.bf16.msra.mxu0 %v646
    %802 = vmatpush.bf16.msra.mxu0 %v644
    %803 = vmatpush.bf16.msra.mxu0 %v642
    %804 = vmatpush.bf16.msra.mxu0 %v640
    %805 = vmatpush.bf16.msra.mxu0 %v638
    %806 = vmatpush.bf16.msra.mxu0 %v636
    %807 = vmatpush.bf16.msra.mxu0 %v634
    %808 = vmatpush.bf16.msra.mxu0 %v632
    %809 = vmatmul.bf16.gmra.mxu0 %v231
    %v810 = vpop.f32.mrf.mxu0
    %v811 = vadd.f32 %v792, %v810
    %v812 = vpop.f32.mrf.mxu0
    %v813 = vadd.f32 %v794, %v812
    %814 = vmatmul.bf16.gmra.mxu0 %v245
    %v815 = vpop.f32.mrf.mxu0
    %v816 = vadd.f32 %v797, %v815
    %v817 = vpop.f32.mrf.mxu0
    %v818 = vadd.f32 %v799, %v817
    %819 = vdwg.mxu0
    %820 = vmatpush.bf16.msra.mxu0 %v662
    %821 = vmatpush.bf16.msra.mxu0 %v660
    %822 = vmatpush.bf16.msra.mxu0 %v658
    %823 = vmatpush.bf16.msra.mxu0 %v656
    %824 = vmatpush.bf16.msra.mxu0 %v654
    %825 = vmatpush.bf16.msra.mxu0 %v652
    %826 = vmatpush.bf16.msra.mxu0 %v650
    %827 = vmatpush.bf16.msra.mxu0 %v648
    %828 = vmatmul.bf16.gmra.mxu0 %v233
    %v829 = vpop.f32.mrf.mxu0
    %v830 = vadd.f32 %v811, %v829
    %v831 = vpop.f32.mrf.mxu0
    %v832 = vadd.f32 %v813, %v831
    %833 = vmatmul.bf16.gmra.mxu0 %v247
    %v834 = vpop.f32.mrf.mxu0
    %v835 = vadd.f32 %v816, %v834
    %v836 = vpop.f32.mrf.mxu0
    %v837 = vadd.f32 %v818, %v836
    %838 = vdwg.mxu0
    %839 = vmatpush.bf16.msra.mxu0 %v599
    %840 = vmatpush.bf16.msra.mxu0 %v597
    %841 = vmatpush.bf16.msra.mxu0 %v595
    %842 = vmatpush.bf16.msra.mxu0 %v593
    %843 = vmatpush.bf16.msra.mxu0 %v591
    %844 = vmatpush.bf16.msra.mxu0 %v589
    %845 = vmatpush.bf16.msra.mxu0 %v587
    %846 = vmatpush.bf16.msra.mxu0 %v585
    %847 = vmatmul.bf16.gmra.mxu0 %v222
    %v848 = vpop.f32.mrf.mxu0
    %v849 = vadd.f32 %v341, %v848
    %v850 = vpop.f32.mrf.mxu0
    %v851 = vadd.f32 %v341, %v850
    %852 = vmatmul.bf16.gmra.mxu0 %v236
    %v853 = vpop.f32.mrf.mxu0
    %v854 = vadd.f32 %v341, %v853
    %v855 = vpop.f32.mrf.mxu0
    %v856 = vadd.f32 %v341, %v855
    %857 = vdwg.mxu0
    %858 = vmatpush.bf16.msra.mxu0 %v615
    %859 = vmatpush.bf16.msra.mxu0 %v613
    %860 = vmatpush.bf16.msra.mxu0 %v611
    %861 = vmatpush.bf16.msra.mxu0 %v609
    %862 = vmatpush.bf16.msra.mxu0 %v607
    %863 = vmatpush.bf16.msra.mxu0 %v605
    %864 = vmatpush.bf16.msra.mxu0 %v603
    %865 = vmatpush.bf16.msra.mxu0 %v601
    %866 = vmatmul.bf16.gmra.mxu0 %v225
    %v867 = vpop.f32.mrf.mxu0
    %v868 = vadd.f32 %v849, %v867
    %v869 = vpop.f32.mrf.mxu0
    %v870 = vadd.f32 %v851, %v869
    %871 = vmatmul.bf16.gmra.mxu0 %v239
    %v872 = vpop.f32.mrf.mxu0
    %v873 = vadd.f32 %v854, %v872
    %v874 = vpop.f32.mrf.mxu0
    %v875 = vadd.f32 %v856, %v874
    %876 = vdwg.mxu0
    %877 = vmatpush.bf16.msra.mxu0 %v631
    %878 = vmatpush.bf16.msra.mxu0 %v629
    %879 = vmatpush.bf16.msra.mxu0 %v627
    %880 = vmatpush.bf16.msra.mxu0 %v625
    %881 = vmatpush.bf16.msra.mxu0 %v623
    %882 = vmatpush.bf16.msra.mxu0 %v621
    %883 = vmatpush.bf16.msra.mxu0 %v619
    %884 = vmatpush.bf16.msra.mxu0 %v617
    %885 = vmatmul.bf16.gmra.mxu0 %v228
    %v886 = vpop.f32.mrf.mxu0
    %v887 = vadd.f32 %v868, %v886
    %v888 = vpop.f32.mrf.mxu0
    %v889 = vadd.f32 %v870, %v888
    %890 = vmatmul.bf16.gmra.mxu0 %v242
    %v891 = vpop.f32.mrf.mxu0
    %v892 = vadd.f32 %v873, %v891
    %v893 = vpop.f32.mrf.mxu0
    %v894 = vadd.f32 %v875, %v893
    %895 = vdwg.mxu0
    %896 = vmatpush.bf16.msra.mxu0 %v647
    %897 = vmatpush.bf16.msra.mxu0 %v645
    %898 = vmatpush.bf16.msra.mxu0 %v643
    %899 = vmatpush.bf16.msra.mxu0 %v641
    %900 = vmatpush.bf16.msra.mxu0 %v639
    %901 = vmatpush.bf16.msra.mxu0 %v637
    %902 = vmatpush.bf16.msra.mxu0 %v635
    %903 = vmatpush.bf16.msra.mxu0 %v633
    %904 = vmatmul.bf16.gmra.mxu0 %v231
    %v905 = vpop.f32.mrf.mxu0
    %v906 = vadd.f32 %v887, %v905
    %v907 = vpop.f32.mrf.mxu0
    %v908 = vadd.f32 %v889, %v907
    %909 = vmatmul.bf16.gmra.mxu0 %v245
    %v910 = vpop.f32.mrf.mxu0
    %v911 = vadd.f32 %v892, %v910
    %v912 = vpop.f32.mrf.mxu0
    %v913 = vadd.f32 %v894, %v912
    %914 = vdwg.mxu0
    %915 = vmatpush.bf16.msra.mxu0 %v663
    %916 = vmatpush.bf16.msra.mxu0 %v661
    %917 = vmatpush.bf16.msra.mxu0 %v659
    %918 = vmatpush.bf16.msra.mxu0 %v657
    %919 = vmatpush.bf16.msra.mxu0 %v655
    %920 = vmatpush.bf16.msra.mxu0 %v653
    %921 = vmatpush.bf16.msra.mxu0 %v651
    %922 = vmatpush.bf16.msra.mxu0 %v649
    %923 = vmatmul.bf16.gmra.mxu0 %v233
    %v924 = vpop.f32.mrf.mxu0
    %v925 = vadd.f32 %v906, %v924
    %v926 = vpop.f32.mrf.mxu0
    %v927 = vadd.f32 %v908, %v926
    %928 = vmatmul.bf16.gmra.mxu0 %v247
    %v929 = vpop.f32.mrf.mxu0
    %v930 = vadd.f32 %v911, %v929
    %v931 = vpop.f32.mrf.mxu0
    %v932 = vadd.f32 %v913, %v931
    %933 = vdwg.mxu0
    %v934 = vxor.u32 %v925, 2147483648
    %v935 = vxor.u32 %v927, 2147483648
    %v936 = vxor.u32 %v930, 2147483648
    %v937 = vxor.u32 %v932, 2147483648
    %v938 = vmul.f32 %v934, 1.442695
    %v939 = vpow.pop %v938
    %v940 = vmul.f32 %v935, 1.442695
    %v941 = vpow.pop %v940
    %v942 = vmul.f32 %v936, 1.442695
    %v943 = vpow.pop %v942
    %v944 = vmul.f32 %v937, 1.442695
    %v945 = vpow.pop %v944
    %v946 = vadd.f32 %v939, 1.0
    %v947 = vadd.f32 %v941, 1.0
    %v948 = vadd.f32 %v943, 1.0
    %v949 = vadd.f32 %v945, 1.0
    %v950 = vrcp.pop %v946
    %v951 = vmul.f32 %v946, %v950
    %v952 = vsub.f32 1.0, %v951
    %v953 = vmul.f32 %v950, %v952
    %v954 = vadd.f32 %v950, %v953
    %vm955 = vweird.f32 %v946
    %vm956 = vweird.f32 %v950
    %vm957 = vmor %vm955, %vm956
    %v958 = vsel %vm957, %v950, %v954
    %v959 = vand.u32 2147483647, %v946
    %vm960 = vcmp.eq.f32.partialorder %v959, 8.507059e+37
    %v961 = vand.u32 %v946, 2147483648
    %v962 = vor.u32 1.1754944e-38, %v961
    %v963 = vsel %vm960, %v962, %v958
    %v964 = vmul.f32 1.0, %v963
    %v965 = vrcp.pop %v947
    %v966 = vmul.f32 %v947, %v965
    %v967 = vsub.f32 1.0, %v966
    %v968 = vmul.f32 %v965, %v967
    %v969 = vadd.f32 %v965, %v968
    %vm970 = vweird.f32 %v947
    %vm971 = vweird.f32 %v965
    %vm972 = vmor %vm970, %vm971
    %v973 = vsel %vm972, %v965, %v969
    %v974 = vand.u32 2147483647, %v947
    %vm975 = vcmp.eq.f32.partialorder %v974, 8.507059e+37
    %v976 = vand.u32 %v947, 2147483648
    %v977 = vor.u32 1.1754944e-38, %v976
    %v978 = vsel %vm975, %v977, %v973
    %v979 = vmul.f32 1.0, %v978
    %v980 = vrcp.pop %v948
    %v981 = vmul.f32 %v948, %v980
    %v982 = vsub.f32 1.0, %v981
    %v983 = vmul.f32 %v980, %v982
    %v984 = vadd.f32 %v980, %v983
    %vm985 = vweird.f32 %v948
    %vm986 = vweird.f32 %v980
    %vm987 = vmor %vm985, %vm986
    %v988 = vsel %vm987, %v980, %v984
    %v989 = vand.u32 2147483647, %v948
    %vm990 = vcmp.eq.f32.partialorder %v989, 8.507059e+37
    %v991 = vand.u32 %v948, 2147483648
    %v992 = vor.u32 1.1754944e-38, %v991
    %v993 = vsel %vm990, %v992, %v988
    %v994 = vmul.f32 1.0, %v993
    %v995 = vrcp.pop %v949
    %v996 = vmul.f32 %v949, %v995
    %v997 = vsub.f32 1.0, %v996
    %v998 = vmul.f32 %v995, %v997
    %v999 = vadd.f32 %v995, %v998
    %vm1000 = vweird.f32 %v949
    %vm1001 = vweird.f32 %v995
    %vm1002 = vmor %vm1000, %vm1001
    %v1003 = vsel %vm1002, %v995, %v999
    %v1004 = vand.u32 2147483647, %v949
    %vm1005 = vcmp.eq.f32.partialorder %v1004, 8.507059e+37
    %v1006 = vand.u32 %v949, 2147483648
    %v1007 = vor.u32 1.1754944e-38, %v1006
    %v1008 = vsel %vm1005, %v1007, %v1003
    %v1009 = vmul.f32 1.0, %v1008
    %v1010 = vmul.f32 %v830, %v964
    %v1011 = vmul.f32 %v832, %v979
    %v1012 = vmul.f32 %v835, %v994
    %v1013 = vmul.f32 %v837, %v1009
    %p1014 = por %p86, %p113
    // Predicated region
    $region42: #{tpu_custom_call.1} parent=1 // pred_check
      %p1015 = pneg %p1014
    $region43: #{tpu_custom_call.1} parent=1 // pred_check_branch
      %1017 = sbr.rel (%p1015) target = $region45
    $region44: #{tpu_custom_call.1} parent=1 // pred_region
      %s1018 = smul.u32 0, 16
      %s1019 = ssub.s32 %s1018, 2
      %v1020 = vlaneseq
      %v1021 = vshrl.u32 %v1020, 7
      %v1022 = vadd.s32 %v1021, 8
      %v1023 = vstv %s1019
      %v1024 = vadd.s32 %v1023, %v1021
      %v1025 = vadd.s32 %v1023, %v1022
      %vm1026 = vcmp.ge.s32.totalorder %v1024, 0
      %vm1027 = vcmp.ge.s32.totalorder %v1025, 0
      %vm1028 = vcmp.lt.s32.totalorder %v1024, 8
      %vm1029 = vcmp.lt.s32.totalorder %v1025, 8
      %vm1030 = vmand %vm1026, %vm1028
      %vm1031 = vmand %vm1027, %vm1029
      %v1032 = vsel %vm1030, 1, 0
      %v1033 = vsel %vm1031, 1, 0
      %vm1034 = vcmp.eq.s32.totalorder %v1032, 1
      %vm1035 = vcmp.eq.s32.totalorder %v1033, 1
      %v1036 = vsel %vm1034, %v1010, -inf
      %v1037 = vsel %vm1035, %v1011, -inf
      %v1038 = vsel %vm1034, %v1012, -inf
      %v1039 = vsel %vm1035, %v1013, -inf
      %v1040 = vld [vmem:[#allocation3] sm:$0x3]
      %v1041 = vmax.f32 %v1036, %v1037
      %v1042 = vrot.slane %v1041, 4
      %v1043 = vmax.f32 %v1041, %v1042
      %v1044 = vrot.slane %v1043, 2
      %v1045 = vmax.f32 %v1043, %v1044
      %v1046 = vrot.slane %v1045, 1
      %v1047 = vmax.f32 %v1045, %v1046
      %v1048 = vmax.f32 %v1038, %v1039
      %v1049 = vrot.slane %v1048, 4
      %v1050 = vmax.f32 %v1048, %v1049
      %v1051 = vrot.slane %v1050, 2
      %v1052 = vmax.f32 %v1050, %v1051
      %v1053 = vrot.slane %v1052, 1
      %v1054 = vmax.f32 %v1052, %v1053
      %vm1057 = vcmask 1041409
      %v1058 = vsel %vm1057, %v1054, %v1047
      %v1060 = vmax.f32 %v1040, %v1058
      %1061 = vst [vmem:[#allocation3] sm:$0x3] %v1060
    $region45: #{tpu_custom_call.1} parent=1 // pred_fallthru
      _
    %p1062 = pneg %p1014
    // Predicated region
    $region46: #{tpu_custom_call.1} parent=1 // pred_check
      _
    $region47: #{tpu_custom_call.1} parent=1 // pred_check_branch
      %1064 = sbr.rel (%p1014) target = $region49
    $region48: #{tpu_custom_call.1} parent=1 // pred_region
      %v1065 = vld [vmem:[#allocation3] sm:$0x3]
      %v1066 = vmax.f32 %v1010, %v1011
      %v1067 = vrot.slane %v1066, 4
      %v1068 = vmax.f32 %v1066, %v1067
      %v1069 = vrot.slane %v1068, 2
      %v1070 = vmax.f32 %v1068, %v1069
      %v1071 = vrot.slane %v1070, 1
      %v1072 = vmax.f32 %v1070, %v1071
      %v1073 = vmax.f32 %v1012, %v1013
      %v1074 = vrot.slane %v1073, 4
      %v1075 = vmax.f32 %v1073, %v1074
      %v1076 = vrot.slane %v1075, 2
      %v1077 = vmax.f32 %v1075, %v1076
      %v1078 = vrot.slane %v1077, 1
      %v1079 = vmax.f32 %v1077, %v1078
      %vm1082 = vcmask 1041409
      %v1083 = vsel %vm1082, %v1079, %v1072
      %v1085 = vmax.f32 %v1065, %v1083
      %1086 = vst [vmem:[#allocation3] sm:$0x3] %v1085
    $region49: #{tpu_custom_call.1} parent=1 // pred_fallthru
      _
    // Predicated region
    $region50: #{tpu_custom_call.1} parent=1 // pred_check
      %p1087 = pneg %p86
    $region51: #{tpu_custom_call.1} parent=1 // pred_check_branch
      %1089 = sbr.rel (%p1087) target = $region53
    $region52: #{tpu_custom_call.1} parent=1 // pred_region
      %v1090 = vld [vmem:[#allocation3] sm:$0x3]
      %1091 = vst [vmem:[#allocation10] sm:$0x3] %v1090
    $region53: #{tpu_custom_call.1} parent=1 // pred_fallthru
      _
    // Predicated region
    $region54: #{tpu_custom_call.1} parent=1 // pred_check
      _
    $region55: #{tpu_custom_call.1} parent=1 // pred_check_branch
      %1093 = sbr.rel (0) target = $region57
    $region56: #{tpu_custom_call.1} parent=1 // pred_region
      %1095 = vsyncadd [#allocation6], 0
      %s1097 = sshll.u32 [#allocation10], 4
      %s1098 = int_to_ptr.vmem [resolvable:$true] %s1097
      %s1099 = sshll.u32 %s3, 4
      %s1100 = int_to_ptr.hbm [resolvable:$true] %s1099
      %1102 = dma.vmem_to_hbm [thread:$0]  %s1098, 32, %s1100, [#allocation6]
    $region57: #{tpu_custom_call.1} parent=1 // pred_fallthru
      _
    // Predicated region
    $region58: #{tpu_custom_call.1} parent=1 // pred_check
      _
    $region59: #{tpu_custom_call.1} parent=1 // pred_check_branch
      %1104 = sbr.rel (0) target = $region61
    $region60: #{tpu_custom_call.1} parent=1 // pred_region
      %1106 = dma.done [#allocation6], 32
    $region61: #{tpu_custom_call.1} parent=1 // pred_fallthru
      _
    %1107 = vsyncpa [#allocation5], 1
    %1108 = vsyncpa [#allocation8], 1
    %1109 = vsyncpa [#allocation6], 1

</llo_original>
